<compile_context>
chip_gen: v7x
topology: tpu7x:2x2x1
jax: 0.10.0
libtpu: 0.0.40
codegen_flags: <defaults>
</compile_context>

<pallas_src>
import jax
import jax.numpy as jnp
from jax.experimental import pallas as pl
from jax.experimental.pallas import tpu as pltpu

# ---- Model / problem sizes (small, consistent with the module) ----
BATCH      = 8
LATENT_DIM = 16
HIDDEN_DIM = 32
OUTPUT_DIM = 4
CLASS_DIM  = 8
OUT_FLAT   = OUTPUT_DIM * CLASS_DIM          # 32

# ---- Packed-parameter layout (all tensors share lane width 32) ----
W1_ROW = 0                                   # w1: (LATENT_DIM, HIDDEN_DIM)
W2_ROW = W1_ROW + LATENT_DIM                 # w2: (HIDDEN_DIM, HIDDEN_DIM)
W3_ROW = W2_ROW + HIDDEN_DIM                 # w3: (HIDDEN_DIM, OUT_FLAT)
B1_ROW = W3_ROW + HIDDEN_DIM                 # b1: (1, HIDDEN_DIM)
B2_ROW = B1_ROW + 1                          # b2: (1, HIDDEN_DIM)
B3_ROW = B2_ROW + 1                          # b3: (1, OUT_FLAT)
USED_ROWS  = B3_ROW + 1                      # 83
TOTAL_ROWS = ((USED_ROWS + 7) // 8) * 8      # 88 (pad to sublane multiple)


def _decoder_kernel(z_ref, p_ref, out_ref):
    """Fused MLP (3 matmuls + biases + ReLUs) + exact grouped softmax."""
    z = z_ref[...]

    # Unpack parameters: static sublane-window slices of the packed VMEM buffer.
    w1 = p_ref[W1_ROW:W1_ROW + LATENT_DIM, :]
    w2 = p_ref[W2_ROW:W2_ROW + HIDDEN_DIM, :]
    w3 = p_ref[W3_ROW:W3_ROW + HIDDEN_DIM, :]
    b1 = p_ref[B1_ROW:B1_ROW + 1, :]
    b2 = p_ref[B2_ROW:B2_ROW + 1, :]
    b3 = p_ref[B3_ROW:B3_ROW + 1, :]

    # Linear 1 + ReLU
    h1 = jnp.dot(z, w1, preferred_element_type=jnp.float32) + b1
    h1 = jnp.maximum(h1, 0.0)

    # Linear 2 + ReLU
    h2 = jnp.dot(h1, w2, preferred_element_type=jnp.float32) + b2
    h2 = jnp.maximum(h2, 0.0)

    # Linear 3 -> logits of shape (B, OUTPUT_DIM * CLASS_DIM)
    logits = jnp.dot(h2, w3, preferred_element_type=jnp.float32) + b3

    # ---- Grouped softmax over each contiguous CLASS_DIM block ----
    # Per-group max subtraction (exactly matches torch.softmax(dim=2) numerics,
    # finite for arbitrary logit magnitudes).  OUTPUT_DIM=4 is a compile-time
    # constant, so this Python loop fully unrolls; all work is tiny VPU/XLU/EUP
    # ops and the final store remains a single unmasked full-block store.
    groups = []
    for g in range(OUTPUT_DIM):
        s = logits[:, g * CLASS_DIM:(g + 1) * CLASS_DIM]          # (B, CLASS_DIM)
        m = jnp.max(s, axis=-1, keepdims=True)
        e = jnp.exp(s - m)
        denom = jnp.sum(e, axis=-1, keepdims=True)
        groups.append(e * pl.reciprocal(denom, approx=False))
    out_ref[...] = jnp.concatenate(groups, axis=-1).astype(out_ref.dtype)


def decoder_forward(z, packed_params):
    """z: (B, latent_dim) f32, packed_params: (88, 32) f32
       -> (B, output_dim, class_dim) f32."""
    B = z.shape[0]
    vmem_spec = pl.BlockSpec(memory_space=pltpu.MemorySpace.VMEM)
    out_flat = pl.pallas_call(
        _decoder_kernel,
        out_shape=jax.ShapeDtypeStruct((B, OUT_FLAT), jnp.float32),
        in_specs=[vmem_spec, vmem_spec],
        out_specs=vmem_spec,
    )(z, packed_params)
    # Same glue as PyTorch's .view(-1, output_dim, class_dim)
    return out_flat.reshape(B, OUTPUT_DIM, CLASS_DIM)


def init_params(key):
    """Deterministic parameter init (weights as (in, out), biases as (1, out))."""
    ks = jax.random.split(key, 6)
    scale1 = 1.0 / jnp.sqrt(LATENT_DIM)
    scale2 = 1.0 / jnp.sqrt(HIDDEN_DIM)
    w1 = jax.random.uniform(ks[0], (LATENT_DIM, HIDDEN_DIM), jnp.float32, -scale1, scale1)
    b1 = jax.random.uniform(ks[1], (1, HIDDEN_DIM), jnp.float32, -scale1, scale1)
    w2 = jax.random.uniform(ks[2], (HIDDEN_DIM, HIDDEN_DIM), jnp.float32, -scale2, scale2)
    b2 = jax.random.uniform(ks[3], (1, HIDDEN_DIM), jnp.float32, -scale2, scale2)
    w3 = jax.random.uniform(ks[4], (HIDDEN_DIM, OUT_FLAT), jnp.float32, -scale2, scale2)
    b3 = jax.random.uniform(ks[5], (1, OUT_FLAT), jnp.float32, -scale2, scale2)
    return (w1, b1, w2, b2, w3, b3)


def pack_params(params):
    """One-time host-side packing of the six tensors into a single (88,32) buffer."""
    w1, b1, w2, b2, w3, b3 = params
    pad = jnp.zeros((TOTAL_ROWS - USED_ROWS, OUT_FLAT), jnp.float32)
    return jnp.concatenate([w1, w2, w3, b1, b2, b3, pad], axis=0)


def decoder_reference(z, params):
    """Pure-JAX reference matching the PyTorch forward."""
    w1, b1, w2, b2, w3, b3 = params
    h1 = jnp.maximum(z @ w1 + b1, 0.0)
    h2 = jnp.maximum(h1 @ w2 + b2, 0.0)
    logits = (h2 @ w3 + b3).reshape(-1, OUTPUT_DIM, CLASS_DIM)
    return jax.nn.softmax(logits, axis=2)


if __name__ == "__main__":
    key = jax.random.PRNGKey(0)
    k_param, k_z = jax.random.split(key)
    params = init_params(k_param)
    packed = pack_params(params)
    z = jax.random.normal(k_z, (BATCH, LATENT_DIM), jnp.float32)

    out = decoder_forward(z, packed)
    out = jax.block_until_ready(out)

    ref = decoder_reference(z, params)
    assert out.shape == (BATCH, OUTPUT_DIM, CLASS_DIM)
    assert jnp.allclose(out, ref, atol=1e-5, rtol=1e-5), "mismatch vs reference"
    # rows of the softmax output should sum to 1
    assert jnp.allclose(out.sum(axis=2), jnp.ones((BATCH, OUTPUT_DIM)), atol=1e-5)

    # Robustness check for the per-group max softmax: huge-magnitude inputs must
    # stay finite and normalized (the row-max version could produce inf/NaN).
    z_big = z * 1000.0
    out_big = jax.block_until_ready(decoder_forward(z_big, packed))
    assert bool(jnp.all(jnp.isfinite(out_big)))
    assert jnp.allclose(out_big.sum(axis=2), jnp.ones((BATCH, OUTPUT_DIM)), atol=1e-5)

    print("KERNEL_OK")
</pallas_src>

<mosaic_0001>
module attributes {stable_mosaic.version = 11 : i64} {
  func.func @_decoder_kernel(%arg0: memref<8x16xf32, #tpu.memory_space<vmem>>, %arg1: memref<88x32xf32, #tpu.memory_space<vmem>>, %arg2: memref<8x32xf32, #tpu.memory_space<vmem>>) attributes {dimension_semantics = [], scalar_prefetch = 0 : i64, scratch_operands = 0 : i64, tpu.core_type = #tpu.core_type<tc>} {
    %c0 = arith.constant 0 : index
    %c0_0 = arith.constant 0 : index
    %0 = vector.load %arg0[%c0, %c0_0] : memref<8x16xf32, #tpu.memory_space<vmem>>, vector<8x16xf32>
    %c0_1 = arith.constant 0 : index
    %c0_2 = arith.constant 0 : index
    %1 = vector.load %arg1[%c0_1, %c0_2] : memref<88x32xf32, #tpu.memory_space<vmem>>, vector<16x32xf32>
    %c16 = arith.constant 16 : index
    %c0_3 = arith.constant 0 : index
    %2 = vector.load %arg1[%c16, %c0_3] : memref<88x32xf32, #tpu.memory_space<vmem>>, vector<32x32xf32>
    %c48 = arith.constant 48 : index
    %c0_4 = arith.constant 0 : index
    %3 = vector.load %arg1[%c48, %c0_4] : memref<88x32xf32, #tpu.memory_space<vmem>>, vector<32x32xf32>
    %c80 = arith.constant 80 : index
    %c0_5 = arith.constant 0 : index
    %4 = vector.load %arg1[%c80, %c0_5] : memref<88x32xf32, #tpu.memory_space<vmem>>, vector<1x32xf32>
    %c81 = arith.constant 81 : index
    %c0_6 = arith.constant 0 : index
    %5 = vector.load %arg1[%c81, %c0_6] : memref<88x32xf32, #tpu.memory_space<vmem>>, vector<1x32xf32>
    %c82 = arith.constant 82 : index
    %c0_7 = arith.constant 0 : index
    %6 = vector.load %arg1[%c82, %c0_7] : memref<88x32xf32, #tpu.memory_space<vmem>>, vector<1x32xf32>
    %cst = arith.constant dense<0.000000e+00> : vector<8x32xf32>
    %7 = tpu.matmul %0, %1, %cst {dimension_numbers = #tpu.dot_dimension_numbers<[1], [0], [0], [1], [0, 0, 1, 1], [], []>} : vector<8x16xf32>, vector<16x32xf32>, vector<8x32xf32> -> vector<8x32xf32>
    %8 = vector.broadcast %4 : vector<1x32xf32> to vector<8x32xf32>
    %9 = arith.addf %7, %8 : vector<8x32xf32>
    %cst_8 = arith.constant 0.000000e+00 : f32
    %10 = vector.broadcast %cst_8 : f32 to vector<8x32xf32>
    %11 = arith.maximumf %9, %10 : vector<8x32xf32>
    %cst_9 = arith.constant dense<0.000000e+00> : vector<8x32xf32>
    %12 = tpu.matmul %11, %2, %cst_9 {dimension_numbers = #tpu.dot_dimension_numbers<[1], [0], [0], [1], [0, 0, 1, 1], [], []>} : vector<8x32xf32>, vector<32x32xf32>, vector<8x32xf32> -> vector<8x32xf32>
    %13 = vector.broadcast %5 : vector<1x32xf32> to vector<8x32xf32>
    %14 = arith.addf %12, %13 : vector<8x32xf32>
    %cst_10 = arith.constant 0.000000e+00 : f32
    %15 = vector.broadcast %cst_10 : f32 to vector<8x32xf32>
    %16 = arith.maximumf %14, %15 : vector<8x32xf32>
    %cst_11 = arith.constant dense<0.000000e+00> : vector<8x32xf32>
    %17 = tpu.matmul %16, %3, %cst_11 {dimension_numbers = #tpu.dot_dimension_numbers<[1], [0], [0], [1], [0, 0, 1, 1], [], []>} : vector<8x32xf32>, vector<32x32xf32>, vector<8x32xf32> -> vector<8x32xf32>
    %18 = vector.broadcast %6 : vector<1x32xf32> to vector<8x32xf32>
    %19 = arith.addf %17, %18 : vector<8x32xf32>
    %20 = vector.extract_strided_slice %19 {offsets = [0, 0], sizes = [8, 8], strides = [1, 1]} : vector<8x32xf32> to vector<8x8xf32>
    %cst_12 = arith.constant dense<0xFF800000> : vector<8xf32>
    %21 = vector.multi_reduction <maximumf>, %20, %cst_12 [1] : vector<8x8xf32> to vector<8xf32>
    %22 = vector.shape_cast %21 : vector<8xf32> to vector<8x1xf32>
    %23 = vector.broadcast %22 : vector<8x1xf32> to vector<8x8xf32>
    %24 = arith.subf %20, %23 : vector<8x8xf32>
    %25 = math.exp %24 : vector<8x8xf32>
    %cst_13 = arith.constant dense<0.000000e+00> : vector<8xf32>
    %26 = vector.multi_reduction <add>, %25, %cst_13 [1] : vector<8x8xf32> to vector<8xf32>
    %27 = vector.shape_cast %26 : vector<8xf32> to vector<8x1xf32>
    %28 = tpu.reciprocal %27 : vector<8x1xf32> -> vector<8x1xf32>
    %29 = vector.broadcast %28 : vector<8x1xf32> to vector<8x8xf32>
    %30 = arith.mulf %25, %29 : vector<8x8xf32>
    %31 = vector.extract_strided_slice %19 {offsets = [0, 8], sizes = [8, 8], strides = [1, 1]} : vector<8x32xf32> to vector<8x8xf32>
    %cst_14 = arith.constant dense<0xFF800000> : vector<8xf32>
    %32 = vector.multi_reduction <maximumf>, %31, %cst_14 [1] : vector<8x8xf32> to vector<8xf32>
    %33 = vector.shape_cast %32 : vector<8xf32> to vector<8x1xf32>
    %34 = vector.broadcast %33 : vector<8x1xf32> to vector<8x8xf32>
    %35 = arith.subf %31, %34 : vector<8x8xf32>
    %36 = math.exp %35 : vector<8x8xf32>
    %cst_15 = arith.constant dense<0.000000e+00> : vector<8xf32>
    %37 = vector.multi_reduction <add>, %36, %cst_15 [1] : vector<8x8xf32> to vector<8xf32>
    %38 = vector.shape_cast %37 : vector<8xf32> to vector<8x1xf32>
    %39 = tpu.reciprocal %38 : vector<8x1xf32> -> vector<8x1xf32>
    %40 = vector.broadcast %39 : vector<8x1xf32> to vector<8x8xf32>
    %41 = arith.mulf %36, %40 : vector<8x8xf32>
    %42 = vector.extract_strided_slice %19 {offsets = [0, 16], sizes = [8, 8], strides = [1, 1]} : vector<8x32xf32> to vector<8x8xf32>
    %cst_16 = arith.constant dense<0xFF800000> : vector<8xf32>
    %43 = vector.multi_reduction <maximumf>, %42, %cst_16 [1] : vector<8x8xf32> to vector<8xf32>
    %44 = vector.shape_cast %43 : vector<8xf32> to vector<8x1xf32>
    %45 = vector.broadcast %44 : vector<8x1xf32> to vector<8x8xf32>
    %46 = arith.subf %42, %45 : vector<8x8xf32>
    %47 = math.exp %46 : vector<8x8xf32>
    %cst_17 = arith.constant dense<0.000000e+00> : vector<8xf32>
    %48 = vector.multi_reduction <add>, %47, %cst_17 [1] : vector<8x8xf32> to vector<8xf32>
    %49 = vector.shape_cast %48 : vector<8xf32> to vector<8x1xf32>
    %50 = tpu.reciprocal %49 : vector<8x1xf32> -> vector<8x1xf32>
    %51 = vector.broadcast %50 : vector<8x1xf32> to vector<8x8xf32>
    %52 = arith.mulf %47, %51 : vector<8x8xf32>
    %53 = vector.extract_strided_slice %19 {offsets = [0, 24], sizes = [8, 8], strides = [1, 1]} : vector<8x32xf32> to vector<8x8xf32>
    %cst_18 = arith.constant dense<0xFF800000> : vector<8xf32>
    %54 = vector.multi_reduction <maximumf>, %53, %cst_18 [1] : vector<8x8xf32> to vector<8xf32>
    %55 = vector.shape_cast %54 : vector<8xf32> to vector<8x1xf32>
    %56 = vector.broadcast %55 : vector<8x1xf32> to vector<8x8xf32>
    %57 = arith.subf %53, %56 : vector<8x8xf32>
    %58 = math.exp %57 : vector<8x8xf32>
    %cst_19 = arith.constant dense<0.000000e+00> : vector<8xf32>
    %59 = vector.multi_reduction <add>, %58, %cst_19 [1] : vector<8x8xf32> to vector<8xf32>
    %60 = vector.shape_cast %59 : vector<8xf32> to vector<8x1xf32>
    %61 = tpu.reciprocal %60 : vector<8x1xf32> -> vector<8x1xf32>
    %62 = vector.broadcast %61 : vector<8x1xf32> to vector<8x8xf32>
    %63 = arith.mulf %58, %62 : vector<8x8xf32>
    %64 = tpu.concatenate %30, %41, %52, %63 in 1 : vector<8x8xf32>, vector<8x8xf32>, vector<8x8xf32>, vector<8x8xf32> -> vector<8x32xf32>
    %c0_20 = arith.constant 0 : index
    %c0_21 = arith.constant 0 : index
    %65 = vector.load %arg2[%c0_20, %c0_21] : memref<8x32xf32, #tpu.memory_space<vmem>>, vector<8x32xf32>
    tpu.vector_store %arg2[%c0_20, %c0_21], %64 {strides = array<i32>} : memref<8x32xf32, #tpu.memory_space<vmem>>, vector<8x32xf32>,
    return
  }
}

</mosaic_0001>

<llo_original>
// kernel: tpu_custom_call.1
$region0: #{tpu_custom_call.1}
  #allocation0 [shape = 'u32[]', space=smem, size = 0x4, offset = 0x4, fixed_abs, tag = 'smem constant byte address 0x4 - core index']
  #allocation1 [shape = 'u32[144,128]{1,0:T(1,128)}', space=vmem, size = 0x12000, scoped, tag = 'internal scratch']
  %s0 = inlined_call_operand.vmem [shape: f32[8,16], index: 0, kind: input, shape index: {}]
  %s1 = inlined_call_operand.vmem [shape: f32[88,32], index: 1, kind: input, shape index: {}]
  %s2 = inlined_call_operand.hbm [shape: f32[8,32], index: 2, kind: output, shape index: {}]
  %s3 = sld [smem:[#allocation0]]
  $region18: #{tpu_custom_call.1} parent=0
    _
  %s5 = ssub.s32 1, %s3
  %s6 = scalar_select 0, %s5, %s3
  $region1: #{tpu_custom_call.1} parent=0
    #allocation2 [shape = 'u8[4096]{0}', space=vmem, size = 0x1000, scoped, tag = 'output window, operand 0, single buffered']
    #allocation3 [shape = 's32[1]{0}', space=sflag, size = 0x4, scoped, tag = 'scoped memory for tpu_custom_call.1']
    %7 = vsyncpa [#allocation3], 0
    // Predicated region
    $region2: #{tpu_custom_call.1} parent=1 // pred_check
      _
    $region3: #{tpu_custom_call.1} parent=1 // pred_check_branch
      %9 = sbr.rel (0) target = $region5
    $region4: #{tpu_custom_call.1} parent=1 // pred_region
      _
    $region5: #{tpu_custom_call.1} parent=1 // pred_fallthru
      _
    // Predicated region
    $region6: #{tpu_custom_call.1} parent=1 // pred_check
      _
    $region7: #{tpu_custom_call.1} parent=1 // pred_check_branch
      %11 = sbr.rel (0) target = $region9
    $region8: #{tpu_custom_call.1} parent=1 // pred_region
      _
    $region9: #{tpu_custom_call.1} parent=1 // pred_fallthru
      _
    %v12 = vld [vmem:[%s0] sm:$0xff]
    %v13 = vld [vmem:[%s1] sm:$0xff]
    %v14 = vld [vmem:[%s1 + $0x8] sm:$0xff]
    %v15 = vld [vmem:[%s1 + $0x10] sm:$0xff]
    %v16 = vld [vmem:[%s1 + $0x18] sm:$0xff]
    %v17 = vld [vmem:[%s1 + $0x20] sm:$0xff]
    %v18 = vld [vmem:[%s1 + $0x28] sm:$0xff]
    %v19 = vld [vmem:[%s1 + $0x30] sm:$0xff]
    %v20 = vld [vmem:[%s1 + $0x38] sm:$0xff]
    %v21 = vld [vmem:[%s1 + $0x40] sm:$0xff]
    %v22 = vld [vmem:[%s1 + $0x48] sm:$0xff]
    %v23 = vld [vmem:[%s1 + $0x50] sm:$0x1]
    %v24 = vld [vmem:[%s1 + $0x51] sm:$0x1]
    %v25 = vld [vmem:[%s1 + $0x52] sm:$0x1]
    %v26 = vlaneseq
    %v27 = vshrl.u32 %v26, 7
    %v28 = vsub.s32 0, %v27
    %v29 = vrot.slane %v23, %v28
    %vm30 = vcmask 130048
    %v32 = vsel %vm30, %v12, 0
    %34 = vmatprep.subr.mxu0 0.0
    %35 = vmatpush1.msra.mxu0 %v13
    %36 = vmatprep.subr.mxu0 0.0
    %37 = vmatpush1.msra.mxu0 %v14
    %38 = vmatprep.subr.mxu0 0.0
    %39 = vmatpush1.msra.mxu0 0.0
    %40 = vmatprep.subr.mxu0 0.0
    %41 = vmatpush1.msra.mxu0 0.0
    %42 = vmatprep.subr.mxu0 0.0
    %43 = vmatpush1.msra.mxu0 0.0
    %44 = vmatprep.subr.mxu0 0.0
    %45 = vmatpush1.msra.mxu0 0.0
    %46 = vmatprep.subr.mxu0 0.0
    %47 = vmatpush1.msra.mxu0 0.0
    %48 = vmatprep.subr.mxu0 0.0
    %49 = vmatpush1.msra.mxu0 0.0
    %50 = vmatprep.subr.mxu0 0.0
    %51 = vmatpush1.msra.mxu0 0.0
    %52 = vmatprep.subr.mxu0 0.0
    %53 = vmatpush1.msra.mxu0 0.0
    %54 = vmatprep.subr.mxu0 0.0
    %55 = vmatpush1.msra.mxu0 0.0
    %56 = vmatprep.subr.mxu0 0.0
    %57 = vmatpush1.msra.mxu0 0.0
    %58 = vmatprep.subr.mxu0 0.0
    %59 = vmatpush1.msra.mxu0 0.0
    %60 = vmatprep.subr.mxu0 0.0
    %61 = vmatpush1.msra.mxu0 0.0
    %62 = vmatprep.subr.mxu0 0.0
    %63 = vmatpush1.msra.mxu0 0.0
    %64 = vmatprep.subr.mxu0 0.0
    %65 = vmatpush1.msra.mxu0 0.0
    %66 = vmatprep.subr.mxu0 0.0
    %67 = vmatpush1.msra.mxu0 0.0
    %68 = vmatprep.subr.mxu0 0.0
    %69 = vmatpush1.msra.mxu0 0.0
    %70 = vmatprep.subr.mxu0 0.0
    %71 = vmatpush1.msra.mxu0 0.0
    %72 = vmatprep.subr.mxu0 0.0
    %73 = vmatpush1.msra.mxu0 0.0
    %74 = vmatprep.subr.mxu0 0.0
    %75 = vmatpush1.msra.mxu0 0.0
    %76 = vmatprep.subr.mxu0 0.0
    %77 = vmatpush1.msra.mxu0 0.0
    %78 = vmatprep.subr.mxu0 0.0
    %79 = vmatpush1.msra.mxu0 0.0
    %80 = vmatprep.subr.mxu0 0.0
    %81 = vmatpush1.msra.mxu0 0.0
    %82 = vmatprep.subr.mxu0 0.0
    %83 = vmatpush1.msra.mxu0 0.0
    %84 = vmatprep.subr.mxu0 0.0
    %85 = vmatpush1.msra.mxu0 0.0
    %86 = vmatprep.subr.mxu0 0.0
    %87 = vmatpush1.msra.mxu0 0.0
    %88 = vmatprep.subr.mxu0 0.0
    %89 = vmatpush1.msra.mxu0 0.0
    %90 = vmatprep.subr.mxu0 0.0
    %91 = vmatpush1.msra.mxu0 0.0
    %92 = vmatprep.subr.mxu0 0.0
    %93 = vmatpush1.msra.mxu0 0.0
    %94 = vmatprep.subr.mxu0 0.0
    %95 = vmatpush1.msra.mxu0 0.0
    %96 = vmatprep.subr.mxu0 0.0
    %97 = vmatpush1.msra.mxu0 0.0
    %98 = vmatprep.mubr.f32.mxu0 0.0
    %99 = vmatmul.mubr.f32.gmra.mrb[0].mxu0 %v32
    %v100 = vpop.f32.mrb[0].mxu0
    %v101 = vadd.f32 %v29, %v100
    %v102 = vpop.f32.mrb[0].mxu0
    %103 = vdwg.mxu0
    %v104 = vmax.f32 %v101, 0.0
    %v105 = vlaneseq
    %v106 = vshrl.u32 %v105, 7
    %v107 = vsub.s32 0, %v106
    %v108 = vrot.slane %v24, %v107
    %vm109 = vcmask 261120
    %v111 = vsel %vm109, %v104, 0
    %113 = vmatprep.subr.mxu0 0.0
    %114 = vmatpush1.msra.mxu0 %v15
    %115 = vmatprep.subr.mxu0 0.0
    %116 = vmatpush1.msra.mxu0 %v16
    %117 = vmatprep.subr.mxu0 0.0
    %118 = vmatpush1.msra.mxu0 %v17
    %119 = vmatprep.subr.mxu0 0.0
    %120 = vmatpush1.msra.mxu0 %v18
    %121 = vmatprep.subr.mxu0 0.0
    %122 = vmatpush1.msra.mxu0 0.0
    %123 = vmatprep.subr.mxu0 0.0
    %124 = vmatpush1.msra.mxu0 0.0
    %125 = vmatprep.subr.mxu0 0.0
    %126 = vmatpush1.msra.mxu0 0.0
    %127 = vmatprep.subr.mxu0 0.0
    %128 = vmatpush1.msra.mxu0 0.0
    %129 = vmatprep.subr.mxu0 0.0
    %130 = vmatpush1.msra.mxu0 0.0
    %131 = vmatprep.subr.mxu0 0.0
    %132 = vmatpush1.msra.mxu0 0.0
    %133 = vmatprep.subr.mxu0 0.0
    %134 = vmatpush1.msra.mxu0 0.0
    %135 = vmatprep.subr.mxu0 0.0
    %136 = vmatpush1.msra.mxu0 0.0
    %137 = vmatprep.subr.mxu0 0.0
    %138 = vmatpush1.msra.mxu0 0.0
    %139 = vmatprep.subr.mxu0 0.0
    %140 = vmatpush1.msra.mxu0 0.0
    %141 = vmatprep.subr.mxu0 0.0
    %142 = vmatpush1.msra.mxu0 0.0
    %143 = vmatprep.subr.mxu0 0.0
    %144 = vmatpush1.msra.mxu0 0.0
    %145 = vmatprep.subr.mxu0 0.0
    %146 = vmatpush1.msra.mxu0 0.0
    %147 = vmatprep.subr.mxu0 0.0
    %148 = vmatpush1.msra.mxu0 0.0
    %149 = vmatprep.subr.mxu0 0.0
    %150 = vmatpush1.msra.mxu0 0.0
    %151 = vmatprep.subr.mxu0 0.0
    %152 = vmatpush1.msra.mxu0 0.0
    %153 = vmatprep.subr.mxu0 0.0
    %154 = vmatpush1.msra.mxu0 0.0
    %155 = vmatprep.subr.mxu0 0.0
    %156 = vmatpush1.msra.mxu0 0.0
    %157 = vmatprep.subr.mxu0 0.0
    %158 = vmatpush1.msra.mxu0 0.0
    %159 = vmatprep.subr.mxu0 0.0
    %160 = vmatpush1.msra.mxu0 0.0
    %161 = vmatprep.subr.mxu0 0.0
    %162 = vmatpush1.msra.mxu0 0.0
    %163 = vmatprep.subr.mxu0 0.0
    %164 = vmatpush1.msra.mxu0 0.0
    %165 = vmatprep.subr.mxu0 0.0
    %166 = vmatpush1.msra.mxu0 0.0
    %167 = vmatprep.subr.mxu0 0.0
    %168 = vmatpush1.msra.mxu0 0.0
    %169 = vmatprep.subr.mxu0 0.0
    %170 = vmatpush1.msra.mxu0 0.0
    %171 = vmatprep.subr.mxu0 0.0
    %172 = vmatpush1.msra.mxu0 0.0
    %173 = vmatprep.subr.mxu0 0.0
    %174 = vmatpush1.msra.mxu0 0.0
    %175 = vmatprep.subr.mxu0 0.0
    %176 = vmatpush1.msra.mxu0 0.0
    %177 = vmatprep.mubr.f32.mxu0 0.0
    %178 = vmatmul.mubr.f32.gmra.mrb[0].mxu0 %v111
    %v179 = vpop.f32.mrb[0].mxu0
    %v180 = vadd.f32 %v108, %v179
    %v181 = vpop.f32.mrb[0].mxu0
    %182 = vdwg.mxu0
    %v183 = vmax.f32 %v180, 0.0
    %v184 = vlaneseq
    %v185 = vshrl.u32 %v184, 7
    %v186 = vsub.s32 0, %v185
    %v187 = vrot.slane %v25, %v186
    %v189 = vsel %vm109, %v183, 0
    %191 = vmatprep.subr.mxu0 0.0
    %192 = vmatpush1.msra.mxu0 %v19
    %193 = vmatprep.subr.mxu0 0.0
    %194 = vmatpush1.msra.mxu0 %v20
    %195 = vmatprep.subr.mxu0 0.0
    %196 = vmatpush1.msra.mxu0 %v21
    %197 = vmatprep.subr.mxu0 0.0
    %198 = vmatpush1.msra.mxu0 %v22
    %199 = vmatprep.subr.mxu0 0.0
    %200 = vmatpush1.msra.mxu0 0.0
    %201 = vmatprep.subr.mxu0 0.0
    %202 = vmatpush1.msra.mxu0 0.0
    %203 = vmatprep.subr.mxu0 0.0
    %204 = vmatpush1.msra.mxu0 0.0
    %205 = vmatprep.subr.mxu0 0.0
    %206 = vmatpush1.msra.mxu0 0.0
    %207 = vmatprep.subr.mxu0 0.0
    %208 = vmatpush1.msra.mxu0 0.0
    %209 = vmatprep.subr.mxu0 0.0
    %210 = vmatpush1.msra.mxu0 0.0
    %211 = vmatprep.subr.mxu0 0.0
    %212 = vmatpush1.msra.mxu0 0.0
    %213 = vmatprep.subr.mxu0 0.0
    %214 = vmatpush1.msra.mxu0 0.0
    %215 = vmatprep.subr.mxu0 0.0
    %216 = vmatpush1.msra.mxu0 0.0
    %217 = vmatprep.subr.mxu0 0.0
    %218 = vmatpush1.msra.mxu0 0.0
    %219 = vmatprep.subr.mxu0 0.0
    %220 = vmatpush1.msra.mxu0 0.0
    %221 = vmatprep.subr.mxu0 0.0
    %222 = vmatpush1.msra.mxu0 0.0
    %223 = vmatprep.subr.mxu0 0.0
    %224 = vmatpush1.msra.mxu0 0.0
    %225 = vmatprep.subr.mxu0 0.0
    %226 = vmatpush1.msra.mxu0 0.0
    %227 = vmatprep.subr.mxu0 0.0
    %228 = vmatpush1.msra.mxu0 0.0
    %229 = vmatprep.subr.mxu0 0.0
    %230 = vmatpush1.msra.mxu0 0.0
    %231 = vmatprep.subr.mxu0 0.0
    %232 = vmatpush1.msra.mxu0 0.0
    %233 = vmatprep.subr.mxu0 0.0
    %234 = vmatpush1.msra.mxu0 0.0
    %235 = vmatprep.subr.mxu0 0.0
    %236 = vmatpush1.msra.mxu0 0.0
    %237 = vmatprep.subr.mxu0 0.0
    %238 = vmatpush1.msra.mxu0 0.0
    %239 = vmatprep.subr.mxu0 0.0
    %240 = vmatpush1.msra.mxu0 0.0
    %241 = vmatprep.subr.mxu0 0.0
    %242 = vmatpush1.msra.mxu0 0.0
    %243 = vmatprep.subr.mxu0 0.0
    %244 = vmatpush1.msra.mxu0 0.0
    %245 = vmatprep.subr.mxu0 0.0
    %246 = vmatpush1.msra.mxu0 0.0
    %247 = vmatprep.subr.mxu0 0.0
    %248 = vmatpush1.msra.mxu0 0.0
    %249 = vmatprep.subr.mxu0 0.0
    %250 = vmatpush1.msra.mxu0 0.0
    %251 = vmatprep.subr.mxu0 0.0
    %252 = vmatpush1.msra.mxu0 0.0
    %253 = vmatprep.subr.mxu0 0.0
    %254 = vmatpush1.msra.mxu0 0.0
    %255 = vmatprep.mubr.f32.mxu0 0.0
    %256 = vmatmul.mubr.f32.gmra.mrb[0].mxu0 %v189
    %v257 = vpop.f32.mrb[0].mxu0
    %v258 = vadd.f32 %v187, %v257
    %v259 = vpop.f32.mrb[0].mxu0
    %260 = vdwg.mxu0
    %vm261 = vcmask 64512
    %v262 = vsel %vm261, %v258, -inf
    %263 = vmax.xlane.f32.xlu0 %v262
    %v264 = vpop.xlane.xlu0 %263
    %v265 = vsub.f32 %v258, %v264
    %v266 = vmul.f32 %v265, 1.442695
    %v267 = vpow.pop %v266
    %v268 = vsel %vm261, %v267, 0.0
    %269 = vadd.xlane.f32.xlu0 %v268
    %v270 = vpop.xlane.xlu0 %269
    %v271 = vrcp.pop %v270
    %v272 = vmul.f32 %v267, %v271
    %vm273 = vcmask 130112
    %v274 = vsel %vm273, %v258, -inf
    %275 = vmax.xlane.f32.xlu0 %v274
    %v276 = vpop.xlane.xlu0 %275
    %v277 = vsub.f32 %v258, %v276
    %v278 = vmul.f32 %v277, 1.442695
    %v279 = vpow.pop %v278
    %281 = vrot.lane.b32.xlu0 %v279, 120
    %v282 = vpop.permute.xlu0 %281
    %v284 = vsel %vm261, %v282, 0.0
    %285 = vadd.xlane.f32.xlu0 %v284
    %v286 = vpop.xlane.xlu0 %285
    %v287 = vrcp.pop %v286
    %v288 = vmul.f32 %v279, %v287
    %vm289 = vcmask 195712
    %v290 = vsel %vm289, %v258, -inf
    %291 = vmax.xlane.f32.xlu0 %v290
    %v292 = vpop.xlane.xlu0 %291
    %v293 = vsub.f32 %v258, %v292
    %v294 = vmul.f32 %v293, 1.442695
    %v295 = vpow.pop %v294
    %297 = vrot.lane.b32.xlu0 %v295, 112
    %v298 = vpop.permute.xlu0 %297
    %v300 = vsel %vm261, %v298, 0.0
    %301 = vadd.xlane.f32.xlu0 %v300
    %v302 = vpop.xlane.xlu0 %301
    %v303 = vrcp.pop %v302
    %v304 = vmul.f32 %v295, %v303
    %vm305 = vcmask 261312
    %v306 = vsel %vm305, %v258, -inf
    %307 = vmax.xlane.f32.xlu0 %v306
    %v308 = vpop.xlane.xlu0 %307
    %v309 = vsub.f32 %v258, %v308
    %v310 = vmul.f32 %v309, 1.442695
    %v311 = vpow.pop %v310
    %313 = vrot.lane.b32.xlu0 %v311, 104
    %v314 = vpop.permute.xlu0 %313
    %v316 = vsel %vm261, %v314, 0.0
    %317 = vadd.xlane.f32.xlu0 %v316
    %v318 = vpop.xlane.xlu0 %317
    %v319 = vrcp.pop %v318
    %v320 = vmul.f32 %v311, %v319
    %v321 = vsel %vm261, %v272, %v288
    %v322 = vsel %vm30, %v321, %v304
    %vm323 = vcmask 195584
    %v324 = vsel %vm323, %v322, %v320
    %325 = vst.msk [vmem:[#allocation2] sm:$0xff] %vm109, %v324
    // Predicated region
    $region10: #{tpu_custom_call.1} parent=1 // pred_check
      _
    $region11: #{tpu_custom_call.1} parent=1 // pred_check_branch
      %327 = sbr.rel (0) target = $region13
    $region12: #{tpu_custom_call.1} parent=1 // pred_region
      %s329 = ssub.s32 128, 128
      %330 = vsyncadd [#allocation3], %s329
      %s332 = sshll.u32 [#allocation2], 4
      %s333 = int_to_ptr.vmem [resolvable:$true] %s332
      %335 = dma.vmem_to_hbm [thread:$0]  %s333, 128, %s2, [#allocation3]
    $region13: #{tpu_custom_call.1} parent=1 // pred_fallthru
      _
    // Predicated region
    $region14: #{tpu_custom_call.1} parent=1 // pred_check
      _
    $region15: #{tpu_custom_call.1} parent=1 // pred_check_branch
      %337 = sbr.rel (0) target = $region17
    $region16: #{tpu_custom_call.1} parent=1 // pred_region
      %338 = dma.done [#allocation3], 128
    $region17: #{tpu_custom_call.1} parent=1 // pred_fallthru
      _
    %339 = vsyncpa [#allocation3], 1

</llo_original>
